<compile_context>
chip_gen: v7x
topology: tpu7x:2x2x1
jax: 0.10.0
libtpu: 0.0.40
codegen_flags: <defaults>
</compile_context>

<pallas_src>
import functools
import math

import jax
import jax.numpy as jnp
from jax.experimental import pallas as pl
from jax.experimental.pallas import tpu as pltpu


_LANES = 128
_MAX_TILE_BYTES = 2 * 1024 * 1024       # per-buffer tile cap (x/pe/out double-buffered ~12 MiB)
_VMEM_LIMIT_BYTES = 32 * 1024 * 1024    # explicit scoped-VMEM limit (covers v5e's 16 MiB default)
_SPLIT_BYTES_MULTI_TC = 128 * 1024      # on 2-TC chips (v7x): force grid >= 2 above this size
_SPLIT_BYTES_SINGLE_TC = 512 * 1024     # on 1-TC chips: only split when step overhead amortizes


def _round_up(n: int, m: int) -> int:
    return ((n + m - 1) // m) * m


def _device_kind() -> str:
    try:
        return jax.devices()[0].device_kind.lower()
    except Exception:
        return ""


def _build_pe_table(d_model: int, max_seq_len: int, dtype=jnp.float32) -> jnp.ndarray:
    """Reproduces the PyTorch __init__ loop exactly (2*i / 2*(i+1) exponents)."""
    pos = jnp.arange(max_seq_len, dtype=jnp.float32)[:, None]        # (L, 1)
    i_even = jnp.arange(0, d_model, 2, dtype=jnp.float32)[None, :]   # (1, D/2)
    div_sin = jnp.power(10000.0, 2.0 * i_even / d_model)             # 10000**(2*i/d)
    div_cos = jnp.power(10000.0, 2.0 * (i_even + 1.0) / d_model)     # 10000**(2*(i+1)/d)
    pe_even = jnp.sin(pos / div_sin)                                  # cols 0,2,4,...
    pe_odd = jnp.cos(pos / div_cos)                                   # cols 1,3,5,...
    pe = jnp.stack([pe_even, pe_odd], axis=-1).reshape(max_seq_len, d_model)
    return pe.astype(dtype)


def _pos_enc_kernel(x_ref, pe_ref, o_ref, *, scale, compute_dtype):
    # Elementwise hot path; compute dtype is f32 unless pure-bf16 I/O on v6e/v7x.
    x = x_ref[...].astype(compute_dtype)
    pe = pe_ref[...].astype(compute_dtype)
    o_ref[...] = (x * jnp.asarray(scale, compute_dtype) + pe).astype(o_ref.dtype)


def positional_encoder(x: jnp.ndarray, pe_table: jnp.ndarray, d_model: int) -> jnp.ndarray:
    """x: (S, D); pe_table: (max_seq_len, D); returns (1, S, D) in x.dtype."""
    seq_len, dm = x.shape
    assert dm == d_model
    max_seq_len, pdm = pe_table.shape
    assert pdm == d_model
    assert seq_len <= max_seq_len, "seq_len exceeds positional-encoding table length"

    out_dtype = x.dtype
    if pe_table.dtype != out_dtype:
        # A mismatched pe dtype silently inflates the pe HBM stream; ideally the
        # table is built once in the target dtype (see __main__).  Cast here.
        pe_table = pe_table.astype(out_dtype)

    scale = float(math.sqrt(d_model))
    itemsize = jnp.dtype(out_dtype).itemsize
    quantum = max(8, 32 // itemsize)          # sublane quantum: 8 f32, 16 bf16, 32 int8

    # ---- lane-dense flatten ------------------------------------------------
    # Pad S only when S*D % 128 != 0 (< 128/gcd(D,128) extra rows); the common
    # shapes (D=32, S % 4 == 0) take the zero-copy path.
    seq_mult = _LANES // math.gcd(d_model, _LANES)
    seq_pad = _round_up(seq_len, seq_mult)
    x_p = x if seq_pad == seq_len else jnp.pad(x, ((0, seq_pad - seq_len), (0, 0)))
    n_rows = (seq_pad * d_model) // _LANES
    x2 = x_p.reshape(n_rows, _LANES)          # row-major reshape: layout glue only

    # pe flattened with the identical row-major layout (no wrapper-side slice).
    pe_flat_len = max_seq_len * d_model
    need = seq_pad * d_model
    if pe_flat_len % _LANES == 0 and pe_flat_len >= need:
        pe2 = pe_table.reshape(pe_flat_len // _LANES, _LANES)   # layout glue only
    else:
        # Rare edge: non-lane-aligned table length, or seq_len right at the end
        # of such a table.  Materialize just the needed lane-aligned prefix.
        pe_flat = pe_table.reshape(-1)[: min(need, pe_flat_len)]
        pe_flat = jnp.pad(pe_flat, (0, need - pe_flat.shape[0]))
        pe2 = pe_flat.reshape(need // _LANES, _LANES)

    # ---- generation-aware knobs --------------------------------------------
    kind = _device_kind()
    multi_tc = "v7" in kind                       # 2 TensorCores per chip
    compute_dtype = (
        jnp.bfloat16
        if (jnp.dtype(out_dtype) == jnp.dtype(jnp.bfloat16) and ("v6" in kind or "v7" in kind))
        else jnp.float32
    )

    # ---- tile selection ------------------------------------------------------
    # As big as the VMEM budget allows; on 2-TC chips cap so large inputs give a
    # grid of >= 2 "parallel" steps (both TensorCores get work).
    cap_rows = max(quantum, (_MAX_TILE_BYTES // (_LANES * itemsize)) // quantum * quantum)
    total_bytes = n_rows * _LANES * itemsize
    split_bytes = _SPLIT_BYTES_MULTI_TC if multi_tc else _SPLIT_BYTES_SINGLE_TC
    if n_rows >= 2 * quantum and total_bytes >= split_bytes:
        cap_rows = min(cap_rows, _round_up(pl.cdiv(n_rows, 2), quantum))
    tile_rows = min(cap_rows, _round_up(n_rows, quantum))   # always a quantum multiple

    kernel = functools.partial(_pos_enc_kernel, scale=scale, compute_dtype=compute_dtype)
    out2 = pl.pallas_call(
        kernel,
        out_shape=jax.ShapeDtypeStruct((n_rows, _LANES), out_dtype),
        grid_spec=pltpu.PrefetchScalarGridSpec(
            num_scalar_prefetch=0,
            grid=(pl.cdiv(n_rows, tile_rows),),   # partial trailing block handled by Pallas
            in_specs=[
                pl.BlockSpec((tile_rows, _LANES), lambda i: (i, 0)),
                # pe shares the flat row indexing, so the same block index pulls the
                # matching rows straight out of the full table.
                pl.BlockSpec((tile_rows, _LANES), lambda i: (i, 0)),
            ],
            out_specs=pl.BlockSpec((tile_rows, _LANES), lambda i: (i, 0)),
        ),
        compiler_params=pltpu.CompilerParams(
            # "parallel" lets multi-TC chips (v7x) shard grid steps across cores.
            dimension_semantics=("parallel",),
            vmem_limit_bytes=_VMEM_LIMIT_BYTES,
        ),
    )(x2, pe2)

    out = out2.reshape(seq_pad, d_model)
    if seq_pad != seq_len:
        out = out[:seq_len]                       # only for the rare padded-seq case
    # PyTorch broadcasting (S, D) + (1, S, D) -> (1, S, D)
    return out[None, :, :]


if __name__ == "__main__":
    d_model = 32
    max_seq_len = 2000
    scale = math.sqrt(d_model)

    pe_table = _build_pe_table(d_model, max_seq_len, dtype=jnp.float32)
    key = jax.random.PRNGKey(0)

    # 1) f32, seq_len=8 (lane-dense, single partial block, no wrapper pad/slice)
    seq_len = 8
    x = jax.random.normal(key, (seq_len, d_model), dtype=jnp.float32)
    out = positional_encoder(x, pe_table, d_model)
    jax.block_until_ready(out)
    ref = x * scale + pe_table[None, :seq_len, :]
    assert out.shape == (1, seq_len, d_model)
    assert jnp.allclose(out, ref, atol=1e-5, rtol=1e-5)

    # 2) f32, seq_len=120 (n_rows=30, single block)
    seq_len2 = 120
    x2 = jax.random.normal(jax.random.PRNGKey(1), (seq_len2, d_model), dtype=jnp.float32)
    out2 = positional_encoder(x2, pe_table, d_model)
    jax.block_until_ready(out2)
    ref2 = x2 * scale + pe_table[None, :seq_len2, :]
    assert out2.shape == (1, seq_len2, d_model)
    assert jnp.allclose(out2, ref2, atol=1e-5, rtol=1e-5)

    # 3) f32, seq_len=7 (S % 4 != 0 -> tiny seq pad, still lane-dense path)
    seq_len3 = 7
    x3 = jax.random.normal(jax.random.PRNGKey(2), (seq_len3, d_model), dtype=jnp.float32)
    out3 = positional_encoder(x3, pe_table, d_model)
    jax.block_until_ready(out3)
    ref3 = x3 * scale + pe_table[None, :seq_len3, :]
    assert out3.shape == (1, seq_len3, d_model)
    assert jnp.allclose(out3, ref3, atol=1e-5, rtol=1e-5)

    # 4) bf16 I/O with a bf16-built table (matched dtypes -> minimal HBM traffic).
    pe_bf16 = _build_pe_table(d_model, max_seq_len, dtype=jnp.bfloat16)
    x_bf16 = x.astype(jnp.bfloat16)
    out_bf16 = positional_encoder(x_bf16, pe_bf16, d_model)
    jax.block_until_ready(out_bf16)
    assert out_bf16.dtype == jnp.bfloat16
    assert out_bf16.shape == (1, seq_len, d_model)
    assert jnp.allclose(out_bf16.astype(jnp.float32), ref, atol=0.3, rtol=0.05)

    print("KERNEL_OK")
</pallas_src>

<mosaic_0001>
module attributes {stable_mosaic.version = 11 : i64} {
  func.func @_pos_enc_kernel(%arg0: i32, %arg1: memref<8x128xf32, #tpu.memory_space<vmem>>, %arg2: memref<8x128xf32, #tpu.memory_space<vmem>>, %arg3: memref<8x128xf32, #tpu.memory_space<vmem>>) attributes {dimension_semantics = [#tpu.dimension_semantics<parallel>], iteration_bounds = array<i64: 1>, scalar_prefetch = 0 : i64, scratch_operands = 0 : i64, tpu.core_type = #tpu.core_type<tc>, window_params = [{transform_indices = @transform_0, window_bounds = array<i64: 8, 128>}, {transform_indices = @transform_1, window_bounds = array<i64: 8, 128>}, {transform_indices = @transform_2, window_bounds = array<i64: 8, 128>}]} {
    %c0 = arith.constant 0 : index
    %c0_0 = arith.constant 0 : index
    %0 = vector.load %arg1[%c0, %c0_0] : memref<8x128xf32, #tpu.memory_space<vmem>>, vector<8x128xf32>
    %c0_1 = arith.constant 0 : index
    %c0_2 = arith.constant 0 : index
    %1 = vector.load %arg2[%c0_1, %c0_2] : memref<8x128xf32, #tpu.memory_space<vmem>>, vector<8x128xf32>
    %cst = arith.constant 5.65685415 : f32
    %2 = vector.broadcast %cst : f32 to vector<8x128xf32>
    %3 = arith.mulf %0, %2 : vector<8x128xf32>
    %4 = arith.addf %3, %1 : vector<8x128xf32>
    %c0_3 = arith.constant 0 : index
    %c0_4 = arith.constant 0 : index
    %5 = vector.load %arg3[%c0_3, %c0_4] : memref<8x128xf32, #tpu.memory_space<vmem>>, vector<8x128xf32>
    tpu.vector_store %arg3[%c0_3, %c0_4], %4 {strides = array<i32>} : memref<8x128xf32, #tpu.memory_space<vmem>>, vector<8x128xf32>,
    return
  }
  func.func @transform_0(%arg0: i32) -> (i32, i32) {
    %c0_i32 = arith.constant 0 : i32
    %c0_i32_0 = arith.constant 0 : i32
    return %arg0, %c0_i32 : i32, i32
  }
  func.func @transform_1(%arg0: i32) -> (i32, i32) {
    %c0_i32 = arith.constant 0 : i32
    %c0_i32_0 = arith.constant 0 : i32
    return %arg0, %c0_i32 : i32, i32
  }
  func.func @transform_2(%arg0: i32) -> (i32, i32) {
    %c0_i32 = arith.constant 0 : i32
    %c0_i32_0 = arith.constant 0 : i32
    return %arg0, %c0_i32 : i32, i32
  }
}

</mosaic_0001>

<llo_original>
// kernel: tpu_custom_call.1
$region0: #{tpu_custom_call.1}
  #allocation0 [shape = 'u32[]', space=smem, size = 0x4, offset = 0x4, fixed_abs, tag = 'smem constant byte address 0x4 - core index']
  #allocation1 [shape = 'u32[144,128]{1,0:T(1,128)}', space=vmem, size = 0x12000, scoped, tag = 'internal scratch']
  %s0 = inlined_call_operand.hbm [shape: f32[2,128], index: 0, kind: input, shape index: {}]
  %s1 = inlined_call_operand.hbm [shape: f32[500,128], index: 1, kind: input, shape index: {}]
  %s2 = inlined_call_operand.hbm [shape: f32[2,128], index: 2, kind: output, shape index: {}]
  %s3 = sld [smem:[#allocation0]]
  $region26: #{tpu_custom_call.1} parent=0
    _
  %s5 = ssub.s32 1, %s3
  %s6 = scalar_select 0, %s5, %s3
  $region1: #{tpu_custom_call.1} parent=0
    #allocation2 [shape = 'u8[4096]{0}', space=vmem, size = 0x1000, scoped, tag = 'input window, operand 0, single buffered']
    #allocation3 [shape = 's32[1]{0}', space=sflag, size = 0x4, scoped, tag = 'scoped memory for tpu_custom_call.1']
    #allocation4 [shape = 's32[1]{0}', space=sflag, size = 0x4, scoped, tag = 'scoped memory for tpu_custom_call.1']
    #allocation5 [shape = 'u8[4096]{0}', space=vmem, size = 0x1000, scoped, tag = 'input window, operand 1, single buffered']
    #allocation6 [shape = 's32[1]{0}', space=sflag, size = 0x4, scoped, tag = 'scoped memory for tpu_custom_call.1']
    #allocation7 [shape = 'u8[4096]{0}', space=vmem, size = 0x1000, scoped, tag = 'output window, operand 0, single buffered']
    %7 = vsyncpa [#allocation3], 0
    %8 = vsyncpa [#allocation6], 0
    %9 = vsyncpa [#allocation4], 0
    // Predicated region
    $region2: #{tpu_custom_call.1} parent=1 // pred_check
      _
    $region3: #{tpu_custom_call.1} parent=1 // pred_check_branch
      %11 = sbr.rel (0) target = $region5
    $region4: #{tpu_custom_call.1} parent=1 // pred_region
      %s13 = ssub.s32 128, 32
      %14 = vsyncadd [#allocation3], %s13
      %s15 = sshll.u32 [#allocation2], 4
      %s16 = int_to_ptr.vmem [resolvable:$true] %s15
      %21 = dma.hbm_to_vmem [thread:$0]  %s0, 32, %s16, [#allocation3], 32, 32, 2
    $region5: #{tpu_custom_call.1} parent=1 // pred_fallthru
      _
    // Predicated region
    $region6: #{tpu_custom_call.1} parent=1 // pred_check
      _
    $region7: #{tpu_custom_call.1} parent=1 // pred_check_branch
      %23 = sbr.rel (0) target = $region9
    $region8: #{tpu_custom_call.1} parent=1 // pred_region
      %s25 = ssub.s32 128, 128
      %26 = vsyncadd [#allocation6], %s25
      %s28 = sshll.u32 [#allocation5], 4
      %s29 = int_to_ptr.vmem [resolvable:$true] %s28
      %31 = dma.hbm_to_vmem [thread:$0]  %s1, 128, %s29, [#allocation6]
    $region9: #{tpu_custom_call.1} parent=1 // pred_fallthru
      _
    // Predicated region
    $region10: #{tpu_custom_call.1} parent=1 // pred_check
      _
    $region11: #{tpu_custom_call.1} parent=1 // pred_check_branch
      %33 = sbr.rel (0) target = $region13
    $region12: #{tpu_custom_call.1} parent=1 // pred_region
      %34 = dma.done [#allocation3], 128
    $region13: #{tpu_custom_call.1} parent=1 // pred_fallthru
      _
    // Predicated region
    $region14: #{tpu_custom_call.1} parent=1 // pred_check
      _
    $region15: #{tpu_custom_call.1} parent=1 // pred_check_branch
      %36 = sbr.rel (0) target = $region17
    $region16: #{tpu_custom_call.1} parent=1 // pred_region
      %37 = dma.done [#allocation6], 128
    $region17: #{tpu_custom_call.1} parent=1 // pred_fallthru
      _
    %v38 = vld [vmem:[#allocation2] sm:$0xff]
    %v39 = vld [vmem:[#allocation5] sm:$0xff]
    %v40 = vmul.f32 %v38, 5.656854
    %v41 = vadd.f32 %v40, %v39
    %42 = vst [vmem:[#allocation7] sm:$0xff] %v41
    // Predicated region
    $region18: #{tpu_custom_call.1} parent=1 // pred_check
      _
    $region19: #{tpu_custom_call.1} parent=1 // pred_check_branch
      %44 = sbr.rel (0) target = $region21
    $region20: #{tpu_custom_call.1} parent=1 // pred_region
      %s46 = ssub.s32 128, 32
      %47 = vsyncadd [#allocation4], %s46
      %s48 = sshll.u32 [#allocation7], 4
      %s49 = int_to_ptr.vmem [resolvable:$true] %s48
      %54 = dma.vmem_to_hbm [thread:$0]  %s49, 32, %s2, [#allocation4], 32, 32, 2
    $region21: #{tpu_custom_call.1} parent=1 // pred_fallthru
      _
    // Predicated region
    $region22: #{tpu_custom_call.1} parent=1 // pred_check
      _
    $region23: #{tpu_custom_call.1} parent=1 // pred_check_branch
      %56 = sbr.rel (0) target = $region25
    $region24: #{tpu_custom_call.1} parent=1 // pred_region
      %57 = dma.done [#allocation4], 128
    $region25: #{tpu_custom_call.1} parent=1 // pred_fallthru
      _
    %58 = vsyncpa [#allocation3], 1
    %59 = vsyncpa [#allocation6], 1
    %60 = vsyncpa [#allocation4], 1

</llo_original>
